<compile_context>
chip_gen: v5e
topology: v5e:2x2
jax: 0.10.0
libtpu: 0.0.40
codegen_flags: <defaults>
</compile_context>

<pallas_src>
import functools

import jax
import jax.numpy as jnp
from jax.experimental import pallas as pl
from jax.experimental.pallas import tpu as pltpu

LANE = 128        # TPU vreg lane width
ROW_BLOCK = 512   # rows of the packed [rows, 128] layout per grid step (large N)


def fused_affine_kernel(wb_ref, x_ref, o_ref, *, out_features):
    """y[f] = x * w[f] + b[f]  -- pure VPU broadcast FMA, batch on lanes.

    wb: SMEM [2*out_features]   (first half = folded weights, second = biases)
    x : VMEM [rows, 128]        (batch packed on the lane axis, zero padded)
    o : VMEM [out_features, rows, 128]
    """
    x = x_ref[...]
    # Static unroll over the 3 output features: 3 scalar-broadcast FMAs, all
    # VPU work, lane-dense stores into the [f, rows, 128] output slab.
    for f in range(out_features):
        o_ref[f] = x * wb_ref[f] + wb_ref[out_features + f]


def framework_forward(x, w1, b1, w2, b2):
    """Fused Linear(1,10) -> Linear(10,3) as one affine map on the TPU VPU."""
    n = x.shape[0]
    out_features = w2.shape[1]                        # 3

    # Algebraic fold of the two Linears (exact: no nonlinearity in between).
    w = (w1 @ w2).reshape(out_features)               # [3]
    b = (b1 @ w2 + b2).reshape(out_features)          # [3]
    wb = jnp.concatenate([w, b]).astype(jnp.float32)  # [6] -> one small SMEM block

    # Pack the batch onto the lane axis: [N, 1] -> [rows, 128] (zero padded).
    rows = pl.cdiv(n, LANE)
    block_rows = min(rows, ROW_BLOCK)
    grid_rows = pl.cdiv(rows, block_rows)
    padded_rows = grid_rows * block_rows
    pad = padded_rows * LANE - n
    x_flat = jnp.pad(x.reshape(n).astype(jnp.float32), (0, pad))
    x_packed = x_flat.reshape(padded_rows, LANE)

    kernel = functools.partial(fused_affine_kernel, out_features=out_features)
    out_shape = jax.ShapeDtypeStruct((out_features, padded_rows, LANE), jnp.float32)

    if grid_rows == 1:
        # Small N: single un-gridded block -> no per-grid-step overhead.
        out = pl.pallas_call(
            kernel,
            out_shape=out_shape,
            in_specs=[
                pl.BlockSpec(memory_space=pltpu.MemorySpace.SMEM),
                pl.BlockSpec(memory_space=pltpu.MemorySpace.VMEM),
            ],
            out_specs=pl.BlockSpec(memory_space=pltpu.MemorySpace.VMEM),
        )(wb, x_packed)
    else:
        # Large N: tile the packed rows. Per step: x block 256 KiB + y block
        # 768 KiB, double buffered ~2 MiB -> safe even on v7x's 64 MiB VMEM.
        out = pl.pallas_call(
            kernel,
            out_shape=out_shape,
            grid=(grid_rows,),
            in_specs=[
                pl.BlockSpec(memory_space=pltpu.MemorySpace.SMEM),
                pl.BlockSpec((block_rows, LANE), lambda i: (i, 0)),
            ],
            out_specs=pl.BlockSpec((out_features, block_rows, LANE),
                                   lambda i: (0, i, 0)),
            compiler_params=pltpu.CompilerParams(
                dimension_semantics=("parallel",)),
        )(wb, x_packed)

    # [3, padded_rows, 128] -> [3, padded] -> keep real batch -> [N, 3]
    y = out.reshape(out_features, padded_rows * LANE)[:, :n].T
    return y


def init_params(key):
    """Deterministic init mimicking torch.nn.Linear defaults (U[-1/sqrt(fan_in), +])."""
    k1, k2, k3, k4 = jax.random.split(key, 4)
    in1, out1 = 1, 10
    in2, out2 = 10, 3
    bound1 = 1.0 / jnp.sqrt(in1)
    bound2 = 1.0 / jnp.sqrt(in2)
    w1 = jax.random.uniform(k1, (in1, out1), jnp.float32, -bound1, bound1)
    b1 = jax.random.uniform(k2, (1, out1), jnp.float32, -bound1, bound1)
    w2 = jax.random.uniform(k3, (in2, out2), jnp.float32, -bound2, bound2)
    b2 = jax.random.uniform(k4, (1, out2), jnp.float32, -bound2, bound2)
    return w1, b1, w2, b2


if __name__ == "__main__":
    key = jax.random.PRNGKey(0)
    k_params, k_x = jax.random.split(key)
    w1, b1, w2, b2 = init_params(k_params)

    # Small batch of scalar features, matching Linear(1, 10) input shape.
    n = 8
    x = jax.random.normal(k_x, (n, 1), dtype=jnp.float32)

    y = framework_forward(x, w1, b1, w2, b2)
    y = jax.block_until_ready(y)

    # Pure-JAX reference (the original two-Linear formulation).
    y_ref = (x @ w1 + b1) @ w2 + b2
    assert y.shape == (n, 3)
    assert jnp.allclose(y, y_ref, atol=1e-5, rtol=1e-5)

    print("KERNEL_OK")
</pallas_src>

<mosaic_0001>
module attributes {stable_mosaic.version = 11 : i64} {
  func.func @fused_affine_kernel(%arg0: memref<6xf32, #tpu.memory_space<smem>>, %arg1: memref<1x128xf32, #tpu.memory_space<vmem>>, %arg2: memref<3x1x128xf32, #tpu.memory_space<vmem>>) attributes {dimension_semantics = [], scalar_prefetch = 0 : i64, scratch_operands = 0 : i64, tpu.core_type = #tpu.core_type<tc>} {
    %c0 = arith.constant 0 : index
    %c0_0 = arith.constant 0 : index
    %0 = vector.load %arg1[%c0, %c0_0] : memref<1x128xf32, #tpu.memory_space<vmem>>, vector<1x128xf32>
    %c0_1 = arith.constant 0 : index
    %1 = memref.load %arg0[%c0_1] : memref<6xf32, #tpu.memory_space<smem>>
    %2 = vector.broadcast %1 : f32 to vector<1x128xf32>
    %3 = arith.mulf %0, %2 : vector<1x128xf32>
    %c3 = arith.constant 3 : index
    %4 = memref.load %arg0[%c3] : memref<6xf32, #tpu.memory_space<smem>>
    %5 = vector.broadcast %4 : f32 to vector<1x128xf32>
    %6 = arith.addf %3, %5 : vector<1x128xf32>
    %c0_2 = arith.constant 0 : index
    %c0_3 = arith.constant 0 : index
    %c0_4 = arith.constant 0 : index
    %7 = vector.load %arg2[%c0_2, %c0_3, %c0_4] : memref<3x1x128xf32, #tpu.memory_space<vmem>>, vector<1x1x128xf32>
    %8 = vector.shape_cast %7 : vector<1x1x128xf32> to vector<1x128xf32>
    %9 = vector.shape_cast %6 : vector<1x128xf32> to vector<1x1x128xf32>
    tpu.vector_store %arg2[%c0_2, %c0_3, %c0_4], %9 {strides = array<i32>} : memref<3x1x128xf32, #tpu.memory_space<vmem>>, vector<1x1x128xf32>,
    %c1 = arith.constant 1 : index
    %10 = memref.load %arg0[%c1] : memref<6xf32, #tpu.memory_space<smem>>
    %11 = vector.broadcast %10 : f32 to vector<1x128xf32>
    %12 = arith.mulf %0, %11 : vector<1x128xf32>
    %c4 = arith.constant 4 : index
    %13 = memref.load %arg0[%c4] : memref<6xf32, #tpu.memory_space<smem>>
    %14 = vector.broadcast %13 : f32 to vector<1x128xf32>
    %15 = arith.addf %12, %14 : vector<1x128xf32>
    %c1_5 = arith.constant 1 : index
    %c0_6 = arith.constant 0 : index
    %c0_7 = arith.constant 0 : index
    %16 = vector.load %arg2[%c1_5, %c0_6, %c0_7] : memref<3x1x128xf32, #tpu.memory_space<vmem>>, vector<1x1x128xf32>
    %17 = vector.shape_cast %16 : vector<1x1x128xf32> to vector<1x128xf32>
    %18 = vector.shape_cast %15 : vector<1x128xf32> to vector<1x1x128xf32>
    tpu.vector_store %arg2[%c1_5, %c0_6, %c0_7], %18 {strides = array<i32>} : memref<3x1x128xf32, #tpu.memory_space<vmem>>, vector<1x1x128xf32>,
    %c2 = arith.constant 2 : index
    %19 = memref.load %arg0[%c2] : memref<6xf32, #tpu.memory_space<smem>>
    %20 = vector.broadcast %19 : f32 to vector<1x128xf32>
    %21 = arith.mulf %0, %20 : vector<1x128xf32>
    %c5 = arith.constant 5 : index
    %22 = memref.load %arg0[%c5] : memref<6xf32, #tpu.memory_space<smem>>
    %23 = vector.broadcast %22 : f32 to vector<1x128xf32>
    %24 = arith.addf %21, %23 : vector<1x128xf32>
    %c2_8 = arith.constant 2 : index
    %c0_9 = arith.constant 0 : index
    %c0_10 = arith.constant 0 : index
    %25 = vector.load %arg2[%c2_8, %c0_9, %c0_10] : memref<3x1x128xf32, #tpu.memory_space<vmem>>, vector<1x1x128xf32>
    %26 = vector.shape_cast %25 : vector<1x1x128xf32> to vector<1x128xf32>
    %27 = vector.shape_cast %24 : vector<1x128xf32> to vector<1x1x128xf32>
    tpu.vector_store %arg2[%c2_8, %c0_9, %c0_10], %27 {strides = array<i32>} : memref<3x1x128xf32, #tpu.memory_space<vmem>>, vector<1x1x128xf32>,
    return
  }
}

</mosaic_0001>

<llo_original>
// kernel: tpu_custom_call.1
$region0: #{tpu_custom_call.1}
  #allocation0 [shape = 'u32[]', space=smem, size = 0x4, offset = 0x4, fixed_abs, tag = 'smem constant byte address 0x4 - core index']
  #allocation1 [shape = 'u32[72,128]{1,0:T(1,128)}', space=vmem, size = 0x9000, scoped, tag = 'internal scratch']
  %s0 = inlined_call_operand.hbm [shape: f32[6], index: 0, kind: input, shape index: {}]
  %s1 = inlined_call_operand.hbm [shape: f32[1,128], index: 1, kind: input, shape index: {}]
  %s2 = inlined_call_operand.hbm [shape: f32[3,1,128], index: 2, kind: output, shape index: {}]
  %s3 = sld [smem:[#allocation0]]
  $region26: #{tpu_custom_call.1} parent=0
    _
  %s5 = ssub.s32 1, %s3
  %s6 = scalar_select 0, %s5, %s3
  $region1: #{tpu_custom_call.1} parent=0
    #allocation2 [shape = 'u8[512]{0}', space=smem, size = 0x200, scoped, tag = 'input window, operand 0, single buffered']
    #allocation3 [shape = 's32[1]{0}', space=sflag, size = 0x4, scoped, tag = 'scoped memory for tpu_custom_call.1']
    #allocation4 [shape = 's32[1]{0}', space=sflag, size = 0x4, scoped, tag = 'scoped memory for tpu_custom_call.1']
    #allocation5 [shape = 's32[1]{0}', space=sflag, size = 0x4, scoped, tag = 'scoped memory for tpu_custom_call.1']
    #allocation6 [shape = 'u8[512]{0}', space=vmem, size = 0x400, scoped, tag = 'input window, operand 1, single buffered']
    #allocation7 [shape = 'u8[1536]{0}', space=vmem, size = 0x800, scoped, tag = 'output window, operand 0, single buffered']
    %7 = vsyncpa [#allocation5], 0
    %8 = vsyncpa [#allocation3], 0
    %9 = vsyncpa [#allocation4], 0
    // Predicated region
    $region2: #{tpu_custom_call.1} parent=1 // pred_check
      _
    $region3: #{tpu_custom_call.1} parent=1 // pred_check_branch
      %11 = sbr.rel (0) target = $region5
    $region4: #{tpu_custom_call.1} parent=1 // pred_region
      %13 = vsyncadd [#allocation5], 0
      %s15 = sshll.u32 %s0, 4
      %s16 = int_to_ptr.hbm [resolvable:$true] %s15
      %18 = dma.hbm_to_smem %s16, 16, [#allocation2], [#allocation5]
    $region5: #{tpu_custom_call.1} parent=1 // pred_fallthru
      _
    // Predicated region
    $region6: #{tpu_custom_call.1} parent=1 // pred_check
      _
    $region7: #{tpu_custom_call.1} parent=1 // pred_check_branch
      %20 = sbr.rel (0) target = $region9
    $region8: #{tpu_custom_call.1} parent=1 // pred_region
      %22 = vsyncadd [#allocation3], 0
      %s24 = sshll.u32 %s1, 4
      %s25 = int_to_ptr.hbm [resolvable:$true] %s24
      %s26 = sshll.u32 [#allocation6], 4
      %s27 = int_to_ptr.vmem [resolvable:$true] %s26
      %29 = dma.hbm_to_vmem [thread:$0]  %s25, 16, %s27, [#allocation3]
    $region9: #{tpu_custom_call.1} parent=1 // pred_fallthru
      _
    // Predicated region
    $region10: #{tpu_custom_call.1} parent=1 // pred_check
      _
    $region11: #{tpu_custom_call.1} parent=1 // pred_check_branch
      %31 = sbr.rel (0) target = $region13
    $region12: #{tpu_custom_call.1} parent=1 // pred_region
      %33 = dma.done [#allocation5], 16
    $region13: #{tpu_custom_call.1} parent=1 // pred_fallthru
      _
    // Predicated region
    $region14: #{tpu_custom_call.1} parent=1 // pred_check
      _
    $region15: #{tpu_custom_call.1} parent=1 // pred_check_branch
      %35 = sbr.rel (0) target = $region17
    $region16: #{tpu_custom_call.1} parent=1 // pred_region
      %37 = dma.done [#allocation3], 16
    $region17: #{tpu_custom_call.1} parent=1 // pred_fallthru
      _
    %38 = sfence
    %v39 = vld [vmem:[#allocation6] sm:$0x1]
    %s40 = sld [smem:[#allocation2]]
    %v41 = vstv %s40
    %v42 = vmul.f32 %v39, %v41
    %s43 = sld [smem:[#allocation2 + $0x3]]
    %v44 = vstv %s43
    %v45 = vadd.f32 %v42, %v44
    %46 = vst [vmem:[#allocation7] sm:$0x1] %v45
    %s47 = sld [smem:[#allocation2 + $0x1]]
    %v48 = vstv %s47
    %v49 = vmul.f32 %v39, %v48
    %s50 = sld [smem:[#allocation2 + $0x4]]
    %v51 = vstv %s50
    %v52 = vadd.f32 %v49, %v51
    %s53 = scalar_lea.vmem [#allocation7], 1
    %54 = vst [vmem:[%s53] sm:$0x1] %v52
    %s55 = sld [smem:[#allocation2 + $0x2]]
    %v56 = vstv %s55
    %v57 = vmul.f32 %v39, %v56
    %s58 = sld [smem:[#allocation2 + $0x5]]
    %v59 = vstv %s58
    %v60 = vadd.f32 %v57, %v59
    %s61 = scalar_lea.vmem [#allocation7], 2
    %62 = vst [vmem:[%s61] sm:$0x1] %v60
    // Predicated region
    $region18: #{tpu_custom_call.1} parent=1 // pred_check
      _
    $region19: #{tpu_custom_call.1} parent=1 // pred_check_branch
      %64 = sbr.rel (0) target = $region21
    $region20: #{tpu_custom_call.1} parent=1 // pred_region
      %66 = vsyncadd [#allocation4], 0
      %s67 = sshll.u32 [#allocation7], 4
      %s68 = int_to_ptr.vmem [resolvable:$true] %s67
      %s69 = sshll.u32 %s2, 4
      %s70 = int_to_ptr.hbm [resolvable:$true] %s69
      %75 = dma.vmem_to_hbm [thread:$0]  %s68, 48, %s70, [#allocation4], 16, 16, 1
    $region21: #{tpu_custom_call.1} parent=1 // pred_fallthru
      _
    // Predicated region
    $region22: #{tpu_custom_call.1} parent=1 // pred_check
      _
    $region23: #{tpu_custom_call.1} parent=1 // pred_check_branch
      %77 = sbr.rel (0) target = $region25
    $region24: #{tpu_custom_call.1} parent=1 // pred_region
      %79 = dma.done [#allocation4], 48
    $region25: #{tpu_custom_call.1} parent=1 // pred_fallthru
      _
    %80 = vsyncpa [#allocation3], 1
    %81 = vsyncpa [#allocation4], 1
    %82 = vsyncpa [#allocation5], 1

</llo_original>
